<compile_context>
chip_gen: v7x
topology: tpu7x:2x2x1
jax: 0.10.0
libtpu: 0.0.40
codegen_flags: <defaults>
</compile_context>

<pallas_src>
import jax
import jax.numpy as jnp
from jax import lax
from jax.experimental import pallas as pl
from jax.experimental.pallas import tpu as pltpu

_INV_SQRT2 = 0.7071067811865476
_MiB = 1024 * 1024


def _gelu_exact(h):
    # Exact GELU (PyTorch nn.GELU() default): 0.5 * x * (1 + erf(x / sqrt(2)))
    return 0.5 * h * (1.0 + lax.erf(h * _INV_SQRT2))


def _expert_kernel_acc(x_ref, w1_ref, b1_ref, w2_ref, b2_ref, o_ref, acc_ref):
    """Variant with an f32 VMEM accumulator (used when the output dtype is not f32)."""
    j = pl.program_id(1)

    @pl.when(j == 0)
    def _():
        acc_ref[...] = jnp.zeros_like(acc_ref)

    # (tm, H) @ (H, tn) -> (tm, tn), f32 accumulation on the MXU.
    h = jnp.dot(x_ref[...], w1_ref[...], preferred_element_type=jnp.float32)
    h = _gelu_exact(h + b1_ref[...].astype(jnp.float32))
    # (Dropout: identity in eval mode.)

    # (tm, tn) @ (tn, H) -> accumulate into (tm, H) f32.
    acc_ref[...] += jnp.dot(h.astype(w2_ref.dtype), w2_ref[...],
                            preferred_element_type=jnp.float32)

    @pl.when(j == pl.num_programs(1) - 1)
    def _():
        o_ref[...] = (acc_ref[...] + b2_ref[...].astype(jnp.float32)).astype(o_ref.dtype)


def _expert_kernel_f32_out(x_ref, w1_ref, b1_ref, w2_ref, b2_ref, o_ref):
    """f32-output variant: accumulate straight into the VMEM-resident output tile
    (its block index is constant across j), saving the separate f32 scratch."""
    j = pl.program_id(1)

    @pl.when(j == 0)
    def _():
        o_ref[...] = jnp.zeros_like(o_ref)

    h = jnp.dot(x_ref[...], w1_ref[...], preferred_element_type=jnp.float32)
    h = _gelu_exact(h + b1_ref[...].astype(jnp.float32))
    # (Dropout: identity in eval mode.)
    o_ref[...] += jnp.dot(h.astype(w2_ref.dtype), w2_ref[...],
                          preferred_element_type=jnp.float32)

    @pl.when(j == pl.num_programs(1) - 1)
    def _():
        o_ref[...] += b2_ref[...].astype(jnp.float32)


def _round_up(x, m):
    return (x + m - 1) // m * m


def _nbytes(shape, dtype):
    n = 1
    for s in shape:
        n *= int(s)
    return n * jnp.dtype(dtype).itemsize


def _tpu_vmem_info():
    """(physical VMEM bytes, #TensorCores).  Defensive: falls back to v7x-safe values."""
    cap, cores = 64 * _MiB, 1
    try:
        info = pltpu.get_tpu_info()
        cap = int(getattr(info, "vmem_capacity_bytes", cap)) or cap
        for name in ("num_tensorcores", "tensorcores_per_chip", "num_cores"):
            v = getattr(info, name, None)
            if v:
                cores = int(v)
                break
    except Exception:
        pass
    return cap, cores


def _footprint(tm, tn, H, x_dt, w_dt, o_dt, use_scratch, wbufs=2):
    """Estimated VMEM bytes: pipelined (multi-buffered) inputs/outputs + accumulator."""
    b = (2 * _nbytes((tm, H), x_dt)                                   # x row tile
         + wbufs * (_nbytes((H, tn), w_dt) + _nbytes((tn, H), w_dt))  # W1 / W2 panels
         + 2 * _nbytes((1, tn), w_dt)                                 # b1 panel
         + 2 * _nbytes((1, H), w_dt)                                  # b2
         + 2 * _nbytes((tm, H), o_dt))                                # output tile
    if use_scratch:
        b += _nbytes((tm, H), jnp.float32)                            # f32 accumulator
    return b


def expert_forward(x, w1, b1, w2, b2, *, tm=None, tn=None,
                   compute_dtype=None, weight_buffers=2):
    """Expert forward: Linear(H,4H) -> GELU(exact) -> Dropout(eval) -> Linear(4H,H).

    x: (N, H). w1: (H, 4H), b1: (1, 4H), w2: (4H, H), b2: (1, H). Returns (N, H) in x.dtype.
    compute_dtype: optionally cast x/W1/W2 (e.g. jnp.bfloat16) for ~2x MXU/HBM throughput.
    """
    N, H = x.shape
    H_in, H4 = w1.shape
    assert H_in == H and w2.shape == (H4, H)
    assert b1.shape == (1, H4) and b2.shape == (1, H)

    out_dtype = x.dtype
    cdt = jnp.dtype(compute_dtype) if compute_dtype is not None else jnp.dtype(x.dtype)
    # Normalize MXU-operand dtypes (avoids silent promotion / VMEM upcasts).
    if x.dtype != cdt:
        x = x.astype(cdt)
    if w1.dtype != cdt:
        w1 = w1.astype(cdt)
    if w2.dtype != cdt:
        w2 = w2.astype(cdt)

    use_scratch = out_dtype != jnp.float32
    wbufs = max(int(weight_buffers), 2)

    # --- generation-aware tile / VMEM-budget selection ------------------------------------
    vmem_cap, n_cores = _tpu_vmem_info()
    budget = max(int(vmem_cap * 3 // 4), 32 * _MiB)   # ~96 MiB on v5e/v6e, ~48 MiB on v7x
    big_vmem = vmem_cap > 96 * _MiB

    # Row tile: big (arithmetic intensity vs. re-streamed W1/W2) on 128-MiB-VMEM chips,
    # tighter on v7x.  Always a multiple of 16 sublanes (covers packed bf16).
    tm_eff = tm if tm is not None else (512 if big_vmem else 256)
    tm_eff = min(int(tm_eff), _round_up(N, 16))
    tm_eff = max(_round_up(tm_eff, 16), 16)
    # Megacore: if only one row tile would exist, split it so both TensorCores get work.
    if tm is None and n_cores >= 2 and _round_up(N, 16) <= tm_eff and tm_eff >= 32:
        tm_eff = _round_up(tm_eff // 2, 16)

    # H4 panel: lane-aligned; H4 is zero-padded to a multiple of the panel when needed
    # (padded W1 columns / b1 / W2 rows contribute exactly zero).
    tn_eff = tn if tn is not None else (1024 if big_vmem else 512)
    tn_eff = min(max(_round_up(int(tn_eff), 128), 128), _round_up(H4, 128))

    # Shrink tiles (tn first, then tm) until the pipelined footprint fits the budget.
    while (_footprint(tm_eff, tn_eff, H, cdt, cdt, out_dtype, use_scratch, wbufs) > budget
           and tn_eff > 256):
        tn_eff = max(_round_up(tn_eff // 2, 128), 256)
    while (_footprint(tm_eff, tn_eff, H, cdt, cdt, out_dtype, use_scratch, wbufs) > budget
           and tm_eff > 64):
        tm_eff = max(_round_up(tm_eff // 2, 16), 64)

    N_pad = _round_up(N, tm_eff)
    H4_pad = _round_up(H4, tn_eff)

    x_p = jnp.pad(x, ((0, N_pad - N), (0, 0))) if N_pad != N else x
    if H4_pad != H4:
        w1 = jnp.pad(w1, ((0, 0), (0, H4_pad - H4)))
        b1 = jnp.pad(b1, ((0, 0), (0, H4_pad - H4)))
        w2 = jnp.pad(w2, ((0, H4_pad - H4), (0, 0)))

    grid = (N_pad // tm_eff, H4_pad // tn_eff)

    footprint = _footprint(tm_eff, tn_eff, H, cdt, cdt, out_dtype, use_scratch, wbufs)
    vmem_limit = int(min(vmem_cap, max(2 * footprint, 64 * _MiB)))

    cost = pl.CostEstimate(
        flops=4 * N_pad * H * H4_pad,                 # two matmuls, 2*M*K*N each
        transcendentals=N_pad * H4_pad,               # erf per intermediate element
        bytes_accessed=(2 * _nbytes((N_pad, H), cdt)
                        + grid[0] * (_nbytes((H, H4_pad), cdt) + _nbytes((H4_pad, H), cdt)
                                     + _nbytes((1, H4_pad), b1.dtype)
                                     + _nbytes((1, H), b2.dtype))),
    )

    # Optional deeper buffering on the two large streamed weight panels (v6e knob).
    w_spec_kwargs = {}
    if wbufs > 2:
        w_spec_kwargs = dict(pipeline_mode=pl.Buffered(wbufs))

    in_specs = [
        pl.BlockSpec((tm_eff, H), lambda i, j: (i, 0)),                   # x row tile (reused over j)
        pl.BlockSpec((H, tn_eff), lambda i, j: (0, j), **w_spec_kwargs),  # W1 panel (streamed)
        pl.BlockSpec((1, tn_eff), lambda i, j: (0, j)),                   # b1 panel
        pl.BlockSpec((tn_eff, H), lambda i, j: (j, 0), **w_spec_kwargs),  # W2 panel (streamed)
        pl.BlockSpec((1, H), lambda i, j: (0, 0)),                        # b2 (tiny, resident)
    ]
    out_spec = pl.BlockSpec((tm_eff, H), lambda i, j: (i, 0))

    kernel = _expert_kernel_acc if use_scratch else _expert_kernel_f32_out
    scratch = [pltpu.VMEM((tm_eff, H), jnp.float32)] if use_scratch else []

    out_p = pl.pallas_call(
        kernel,
        out_shape=jax.ShapeDtypeStruct((N_pad, H), out_dtype),
        grid_spec=pltpu.PrefetchScalarGridSpec(
            num_scalar_prefetch=0,
            grid=grid,
            in_specs=in_specs,
            out_specs=out_spec,
            scratch_shapes=scratch,
        ),
        compiler_params=pltpu.CompilerParams(
            dimension_semantics=("parallel", "arbitrary"),
            vmem_limit_bytes=vmem_limit,
        ),
        cost_estimate=cost,
    )(x_p, w1, b1, w2, b2)

    return out_p[:N] if N_pad != N else out_p


def expert_reference(x, w1, b1, w2, b2):
    h = x @ w1 + b1
    h = 0.5 * h * (1.0 + lax.erf(h * _INV_SQRT2))
    return h @ w2 + b2


def _make_params(key, hidden):
    k_w1, k_b1, k_w2, k_b2 = jax.random.split(key, 4)
    # Shapes from Expert.__init__: Linear(H, 4H), Linear(4H, H), stored [in, out].
    w1 = jax.random.uniform(k_w1, (hidden, 4 * hidden), jnp.float32, -1.0, 1.0) / jnp.sqrt(float(hidden))
    b1 = jax.random.uniform(k_b1, (1, 4 * hidden), jnp.float32, -1.0, 1.0) / jnp.sqrt(float(hidden))
    w2 = jax.random.uniform(k_w2, (4 * hidden, hidden), jnp.float32, -1.0, 1.0) / jnp.sqrt(float(4 * hidden))
    b2 = jax.random.uniform(k_b2, (1, hidden), jnp.float32, -1.0, 1.0) / jnp.sqrt(float(4 * hidden))
    return w1, b1, w2, b2


if __name__ == "__main__":
    key = jax.random.PRNGKey(0)
    k0, k1, k2, k3, k4 = jax.random.split(key, 5)

    # Tolerances: f32 matmuls may use the MXU's default (bf16-pass) precision both in the
    # kernel and the XLA reference; keep the check loose enough for that, tight enough to
    # catch any structural bug (those produce O(0.1+) errors).
    F32_TOL = dict(atol=1e-2, rtol=1e-2)

    # Case 1: module-sized toy shapes (batch=2, seq=8, hidden=32), defaults.
    batch, seq, hidden = 2, 8, 32
    w1, b1, w2, b2 = _make_params(k0, hidden)
    x = jax.random.normal(k1, (batch, seq, hidden), jnp.float32)
    x2d = x.reshape(batch * seq, hidden)
    out = expert_forward(x2d, w1, b1, w2, b2).reshape(batch, seq, hidden)
    jax.block_until_ready(out)
    ref = expert_reference(x2d, w1, b1, w2, b2).reshape(batch, seq, hidden)
    assert out.shape == (batch, seq, hidden)
    assert jnp.allclose(out, ref, **F32_TOL), "mismatch vs reference (case 1)"

    # Case 2: ragged row count (exercises row-padding path), hidden=128.
    hidden2 = 128
    w1b, b1b, w2b, b2b = _make_params(k2, hidden2)
    xb = jax.random.normal(k3, (6, hidden2), jnp.float32)
    outb = expert_forward(xb, w1b, b1b, w2b, b2b)
    jax.block_until_ready(outb)
    assert jnp.allclose(outb, expert_reference(xb, w1b, b1b, w2b, b2b), **F32_TOL), \
        "mismatch vs reference (case 2)"

    # Case 3: multiple H4 panels (exercises the reduction axis / in-place accumulation).
    xc = jax.random.normal(k1, (24, hidden2), jnp.float32)
    outc = expert_forward(xc, w1b, b1b, w2b, b2b, tn=128)
    jax.block_until_ready(outc)
    assert jnp.allclose(outc, expert_reference(xc, w1b, b1b, w2b, b2b), **F32_TOL), \
        "mismatch vs reference (case 3)"

    # Case 4: H4 not a multiple of the requested panel (exercises zero-padding of H4).
    hidden3 = 96                     # H4 = 384; tn=256 -> padded to 512
    w1c, b1c, w2c, b2c = _make_params(k4, hidden3)
    xd = jax.random.normal(k3, (10, hidden3), jnp.float32)
    outd = expert_forward(xd, w1c, b1c, w2c, b2c, tn=256)
    jax.block_until_ready(outd)
    assert jnp.allclose(outd, expert_reference(xd, w1c, b1c, w2c, b2c), **F32_TOL), \
        "mismatch vs reference (case 4)"

    # Case 5: bf16 compute path (bf16 MXU operands, f32 accumulation, f32 output dtype).
    oute = expert_forward(xc, w1b, b1b, w2b, b2b, compute_dtype=jnp.bfloat16)
    jax.block_until_ready(oute)
    assert jnp.allclose(oute, expert_reference(xc, w1b, b1b, w2b, b2b), atol=5e-2, rtol=5e-2), \
        "mismatch vs reference (case 5)"

    print("KERNEL_OK")
</pallas_src>

<mosaic_0001>
module attributes {stable_mosaic.version = 11 : i64} {
  func.func @_expert_kernel_f32_out(%arg0: i32, %arg1: i32, %arg2: memref<16x32xf32, #tpu.memory_space<vmem>>, %arg3: memref<32x128xf32, #tpu.memory_space<vmem>>, %arg4: memref<1x128xf32, #tpu.memory_space<vmem>>, %arg5: memref<128x32xf32, #tpu.memory_space<vmem>>, %arg6: memref<1x32xf32, #tpu.memory_space<vmem>>, %arg7: memref<16x32xf32, #tpu.memory_space<vmem>>) attributes {dimension_semantics = [#tpu.dimension_semantics<parallel>, #tpu.dimension_semantics<arbitrary>], iteration_bounds = array<i64: 1, 1>, scalar_prefetch = 0 : i64, scratch_operands = 0 : i64, tpu.core_type = #tpu.core_type<tc>, window_params = [{transform_indices = @transform_0, window_bounds = array<i64: 16, 32>}, {transform_indices = @transform_1, window_bounds = array<i64: 32, 128>}, {transform_indices = @transform_2, window_bounds = array<i64: 1, 128>}, {transform_indices = @transform_3, window_bounds = array<i64: 128, 32>}, {pipeline_mode = #tpu.pipeline_mode<synchronous>, transform_indices = @transform_4, window_bounds = array<i64: 1, 32>}, {transform_indices = @transform_5, window_bounds = array<i64: 16, 32>}]} {
    %c0_i32 = arith.constant 0 : i32
    %0 = arith.cmpi eq, %arg1, %c0_i32 : i32
    %1 = arith.extui %0 : i1 to i32
    %c0_i32_0 = arith.constant 0 : i32
    %2 = arith.cmpi ne, %1, %c0_i32_0 : i32
    scf.if %2 {
      %cst_18 = arith.constant 0.000000e+00 : f32
      %25 = vector.broadcast %cst_18 : f32 to vector<16x32xf32>
      %c0_19 = arith.constant 0 : index
      %c0_20 = arith.constant 0 : index
      %26 = vector.load %arg7[%c0_19, %c0_20] : memref<16x32xf32, #tpu.memory_space<vmem>>, vector<16x32xf32>
      tpu.vector_store %arg7[%c0_19, %c0_20], %25 {strides = array<i32>} : memref<16x32xf32, #tpu.memory_space<vmem>>, vector<16x32xf32>,
    } else {
    }
    %c0 = arith.constant 0 : index
    %c0_1 = arith.constant 0 : index
    %3 = vector.load %arg2[%c0, %c0_1] : memref<16x32xf32, #tpu.memory_space<vmem>>, vector<16x32xf32>
    %c0_2 = arith.constant 0 : index
    %c0_3 = arith.constant 0 : index
    %4 = vector.load %arg3[%c0_2, %c0_3] : memref<32x128xf32, #tpu.memory_space<vmem>>, vector<32x128xf32>
    %cst = arith.constant dense<0.000000e+00> : vector<16x128xf32>
    %5 = tpu.matmul %3, %4, %cst {dimension_numbers = #tpu.dot_dimension_numbers<[1], [0], [0], [1], [0, 0, 1, 1], [], []>} : vector<16x32xf32>, vector<32x128xf32>, vector<16x128xf32> -> vector<16x128xf32>
    %c0_4 = arith.constant 0 : index
    %c0_5 = arith.constant 0 : index
    %6 = vector.load %arg4[%c0_4, %c0_5] : memref<1x128xf32, #tpu.memory_space<vmem>>, vector<1x128xf32>
    %7 = vector.broadcast %6 : vector<1x128xf32> to vector<16x128xf32>
    %8 = arith.addf %5, %7 : vector<16x128xf32>
    %cst_6 = arith.constant 5.000000e-01 : f32
    %9 = vector.broadcast %cst_6 : f32 to vector<16x128xf32>
    %10 = arith.mulf %9, %8 : vector<16x128xf32>
    %cst_7 = arith.constant 0.707106769 : f32
    %11 = vector.broadcast %cst_7 : f32 to vector<16x128xf32>
    %12 = arith.mulf %8, %11 : vector<16x128xf32>
    %13 = math.erf %12 : vector<16x128xf32>
    %cst_8 = arith.constant 1.000000e+00 : f32
    %14 = vector.broadcast %cst_8 : f32 to vector<16x128xf32>
    %15 = arith.addf %14, %13 : vector<16x128xf32>
    %16 = arith.mulf %10, %15 : vector<16x128xf32>
    %c0_9 = arith.constant 0 : index
    %c0_10 = arith.constant 0 : index
    %17 = vector.load %arg7[%c0_9, %c0_10] : memref<16x32xf32, #tpu.memory_space<vmem>>, vector<16x32xf32>
    %c0_11 = arith.constant 0 : index
    %c0_12 = arith.constant 0 : index
    %18 = vector.load %arg5[%c0_11, %c0_12] : memref<128x32xf32, #tpu.memory_space<vmem>>, vector<128x32xf32>
    %cst_13 = arith.constant dense<0.000000e+00> : vector<16x32xf32>
    %19 = tpu.matmul %16, %18, %cst_13 {dimension_numbers = #tpu.dot_dimension_numbers<[1], [0], [0], [1], [0, 0, 1, 1], [], []>} : vector<16x128xf32>, vector<128x32xf32>, vector<16x32xf32> -> vector<16x32xf32>
    %20 = arith.addf %17, %19 : vector<16x32xf32>
    %c0_14 = arith.constant 0 : index
    %c0_15 = arith.constant 0 : index
    %21 = vector.load %arg7[%c0_14, %c0_15] : memref<16x32xf32, #tpu.memory_space<vmem>>, vector<16x32xf32>
    tpu.vector_store %arg7[%c0_14, %c0_15], %20 {strides = array<i32>} : memref<16x32xf32, #tpu.memory_space<vmem>>, vector<16x32xf32>,
    %c0_i32_16 = arith.constant 0 : i32
    %22 = arith.cmpi eq, %arg1, %c0_i32_16 : i32
    %23 = arith.extui %22 : i1 to i32
    %c0_i32_17 = arith.constant 0 : i32
    %24 = arith.cmpi ne, %23, %c0_i32_17 : i32
    scf.if %24 {
      %c0_18 = arith.constant 0 : index
      %c0_19 = arith.constant 0 : index
      %25 = vector.load %arg7[%c0_18, %c0_19] : memref<16x32xf32, #tpu.memory_space<vmem>>, vector<16x32xf32>
      %c0_20 = arith.constant 0 : index
      %c0_21 = arith.constant 0 : index
      %26 = vector.load %arg6[%c0_20, %c0_21] : memref<1x32xf32, #tpu.memory_space<vmem>>, vector<1x32xf32>
      %27 = vector.broadcast %26 : vector<1x32xf32> to vector<16x32xf32>
      %28 = arith.addf %25, %27 : vector<16x32xf32>
      %c0_22 = arith.constant 0 : index
      %c0_23 = arith.constant 0 : index
      %29 = vector.load %arg7[%c0_22, %c0_23] : memref<16x32xf32, #tpu.memory_space<vmem>>, vector<16x32xf32>
      tpu.vector_store %arg7[%c0_22, %c0_23], %28 {strides = array<i32>} : memref<16x32xf32, #tpu.memory_space<vmem>>, vector<16x32xf32>,
    } else {
    }
    return
  }
  func.func @transform_0(%arg0: i32, %arg1: i32) -> (i32, i32) {
    %c0_i32 = arith.constant 0 : i32
    %c0_i32_0 = arith.constant 0 : i32
    return %arg0, %c0_i32 : i32, i32
  }
  func.func @transform_1(%arg0: i32, %arg1: i32) -> (i32, i32) {
    %c0_i32 = arith.constant 0 : i32
    %c0_i32_0 = arith.constant 0 : i32
    return %c0_i32, %arg1 : i32, i32
  }
  func.func @transform_2(%arg0: i32, %arg1: i32) -> (i32, i32) {
    %c0_i32 = arith.constant 0 : i32
    %c0_i32_0 = arith.constant 0 : i32
    return %c0_i32, %arg1 : i32, i32
  }
  func.func @transform_3(%arg0: i32, %arg1: i32) -> (i32, i32) {
    %c0_i32 = arith.constant 0 : i32
    %c0_i32_0 = arith.constant 0 : i32
    return %arg1, %c0_i32 : i32, i32
  }
  func.func @transform_4(%arg0: i32, %arg1: i32) -> (i32, i32) {
    %c0_i32 = arith.constant 0 : i32
    %c0_i32_0 = arith.constant 0 : i32
    %c0_i32_1 = arith.constant 0 : i32
    return %c0_i32, %c0_i32_0 : i32, i32
  }
  func.func @transform_5(%arg0: i32, %arg1: i32) -> (i32, i32) {
    %c0_i32 = arith.constant 0 : i32
    %c0_i32_0 = arith.constant 0 : i32
    return %arg0, %c0_i32 : i32, i32
  }
}

</mosaic_0001>

<llo_original>
// kernel: tpu_custom_call.1
$region0: #{tpu_custom_call.1}
  #allocation0 [shape = 'u32[]', space=smem, size = 0x4, offset = 0x4, fixed_abs, tag = 'smem constant byte address 0x4 - core index']
  #allocation1 [shape = 'u32[144,128]{1,0:T(1,128)}', space=vmem, size = 0x12000, scoped, tag = 'internal scratch']
  %s0 = inlined_call_operand.hbm [shape: f32[16,32], index: 0, kind: input, shape index: {}]
  %s1 = inlined_call_operand.hbm [shape: f32[32,128], index: 1, kind: input, shape index: {}]
  %s2 = inlined_call_operand.hbm [shape: f32[1,128], index: 2, kind: input, shape index: {}]
  %s3 = inlined_call_operand.hbm [shape: f32[128,32], index: 3, kind: input, shape index: {}]
  %s4 = inlined_call_operand.hbm [shape: f32[1,32], index: 4, kind: input, shape index: {}]
  %s5 = inlined_call_operand.hbm [shape: f32[16,32], index: 5, kind: output, shape index: {}]
  %s6 = sld [smem:[#allocation0]]
  $region58: #{tpu_custom_call.1} parent=0
    _
  %s8 = ssub.s32 1, %s6
  %s9 = scalar_select 0, %s8, %s6
  $region1: #{tpu_custom_call.1} parent=0
    #allocation2 [shape = 'u8[8192]{0}', space=vmem, size = 0x2000, scoped, tag = 'input window, operand 0, single buffered']
    #allocation3 [shape = 's32[1]{0}', space=sflag, size = 0x4, scoped, tag = 'scoped memory for tpu_custom_call.1']
    #allocation4 [shape = 's32[1]{0}', space=sflag, size = 0x4, scoped, tag = 'scoped memory for tpu_custom_call.1']
    #allocation5 [shape = 'u8[16384]{0}', space=vmem, size = 0x4000, scoped, tag = 'input window, operand 1, single buffered']
    #allocation6 [shape = 's32[1]{0}', space=sflag, size = 0x4, scoped, tag = 'scoped memory for tpu_custom_call.1']
    #allocation7 [shape = 'u8[512]{0}', space=vmem, size = 0x400, scoped, tag = 'input window, operand 2, single buffered']
    #allocation8 [shape = 'u8[65536]{0}', space=vmem, size = 0x10000, scoped, tag = 'input window, operand 3, single buffered']
    #allocation9 [shape = 's32[1]{0}', space=sflag, size = 0x4, scoped, tag = 'scoped memory for tpu_custom_call.1']
    #allocation10 [shape = 'u8[512]{0}', space=vmem, size = 0x400, scoped, tag = 'input window, operand 4, single buffered']
    #allocation11 [shape = 'u8[8192]{0}', space=vmem, size = 0x2000, scoped, tag = 'output window, operand 0, single buffered']
    %10 = vsyncpa [#allocation3], 0
    %11 = vsyncpa [#allocation6], 0
    %12 = vsyncpa [#allocation9], 0
    %13 = vsyncpa [#allocation4], 0
    // Predicated region
    $region2: #{tpu_custom_call.1} parent=1 // pred_check
      _
    $region3: #{tpu_custom_call.1} parent=1 // pred_check_branch
      %15 = sbr.rel (0) target = $region5
    $region4: #{tpu_custom_call.1} parent=1 // pred_region
      %s17 = ssub.s32 256, 256
      %18 = vsyncadd [#allocation3], %s17
      %s19 = sshll.u32 [#allocation2], 4
      %s20 = int_to_ptr.vmem [resolvable:$true] %s19
      %25 = dma.hbm_to_vmem [thread:$0]  %s0, 256, %s20, [#allocation3], 128, 128, 8
    $region5: #{tpu_custom_call.1} parent=1 // pred_fallthru
      _
    // Predicated region
    $region6: #{tpu_custom_call.1} parent=1 // pred_check
      _
    $region7: #{tpu_custom_call.1} parent=1 // pred_check_branch
      %27 = sbr.rel (0) target = $region9
    $region8: #{tpu_custom_call.1} parent=1 // pred_region
      %s29 = ssub.s32 512, 512
      %30 = vsyncadd [#allocation6], %s29
      %s31 = sshll.u32 [#allocation5], 4
      %s32 = int_to_ptr.vmem [resolvable:$true] %s31
      %37 = dma.hbm_to_vmem [thread:$0]  %s1, 512, %s32, [#allocation6], 128, 128, 8
    $region9: #{tpu_custom_call.1} parent=1 // pred_fallthru
      _
    // Predicated region
    $region10: #{tpu_custom_call.1} parent=1 // pred_check
      _
    $region11: #{tpu_custom_call.1} parent=1 // pred_check_branch
      %39 = sbr.rel (0) target = $region13
    $region12: #{tpu_custom_call.1} parent=1 // pred_region
      %s41 = ssub.s32 16, 16
      %42 = vsyncadd [#allocation6], %s41
      %s44 = sshll.u32 [#allocation7], 4
      %s45 = int_to_ptr.vmem [resolvable:$true] %s44
      %47 = dma.hbm_to_vmem [thread:$0]  %s2, 16, %s45, [#allocation6]
    $region13: #{tpu_custom_call.1} parent=1 // pred_fallthru
      _
    // Predicated region
    $region14: #{tpu_custom_call.1} parent=1 // pred_check
      _
    $region15: #{tpu_custom_call.1} parent=1 // pred_check_branch
      %49 = sbr.rel (0) target = $region17
    $region16: #{tpu_custom_call.1} parent=1 // pred_region
      %s51 = ssub.s32 2048, 2048
      %52 = vsyncadd [#allocation9], %s51
      %s53 = sshll.u32 [#allocation8], 4
      %s54 = int_to_ptr.vmem [resolvable:$true] %s53
      %59 = dma.hbm_to_vmem [thread:$0]  %s3, 2048, %s54, [#allocation9], 128, 128, 8
    $region17: #{tpu_custom_call.1} parent=1 // pred_fallthru
      _
    // Predicated region
    $region18: #{tpu_custom_call.1} parent=1 // pred_check
      _
    $region19: #{tpu_custom_call.1} parent=1 // pred_check_branch
      %61 = sbr.rel (0) target = $region21
    $region20: #{tpu_custom_call.1} parent=1 // pred_region
      %s63 = ssub.s32 16, 16
      %64 = vsyncadd [#allocation9], %s63
      %s66 = sshll.u32 [#allocation10], 4
      %s67 = int_to_ptr.vmem [resolvable:$true] %s66
      %69 = dma.hbm_to_vmem [thread:$0]  %s4, 16, %s67, [#allocation9]
    $region21: #{tpu_custom_call.1} parent=1 // pred_fallthru
      _
    // Predicated region
    $region22: #{tpu_custom_call.1} parent=1 // pred_check
      _
    $region23: #{tpu_custom_call.1} parent=1 // pred_check_branch
      %71 = sbr.rel (0) target = $region25
    $region24: #{tpu_custom_call.1} parent=1 // pred_region
      %72 = dma.done [#allocation3], 256
    $region25: #{tpu_custom_call.1} parent=1 // pred_fallthru
      _
    // Predicated region
    $region26: #{tpu_custom_call.1} parent=1 // pred_check
      _
    $region27: #{tpu_custom_call.1} parent=1 // pred_check_branch
      %74 = sbr.rel (0) target = $region29
    $region28: #{tpu_custom_call.1} parent=1 // pred_region
      %75 = dma.done [#allocation6], 512
    $region29: #{tpu_custom_call.1} parent=1 // pred_fallthru
      _
    // Predicated region
    $region30: #{tpu_custom_call.1} parent=1 // pred_check
      _
    $region31: #{tpu_custom_call.1} parent=1 // pred_check_branch
      %77 = sbr.rel (0) target = $region33
    $region32: #{tpu_custom_call.1} parent=1 // pred_region
      %78 = dma.done [#allocation6], 16
    $region33: #{tpu_custom_call.1} parent=1 // pred_fallthru
      _
    // Predicated region
    $region34: #{tpu_custom_call.1} parent=1 // pred_check
      _
    $region35: #{tpu_custom_call.1} parent=1 // pred_check_branch
      %80 = sbr.rel (0) target = $region37
    $region36: #{tpu_custom_call.1} parent=1 // pred_region
      %81 = dma.done [#allocation9], 2048
    $region37: #{tpu_custom_call.1} parent=1 // pred_fallthru
      _
    // Predicated region
    $region38: #{tpu_custom_call.1} parent=1 // pred_check
      _
    $region39: #{tpu_custom_call.1} parent=1 // pred_check_branch
      %83 = sbr.rel (0) target = $region41
    $region40: #{tpu_custom_call.1} parent=1 // pred_region
      %84 = dma.done [#allocation9], 16
    $region41: #{tpu_custom_call.1} parent=1 // pred_fallthru
      _
    %p85 = scmp.eq.s32.totalorder 0, 0
    // Predicated region
    $region42: #{tpu_custom_call.1} parent=1 // pred_check
      %p86 = pneg %p85
    $region43: #{tpu_custom_call.1} parent=1 // pred_check_branch
      %88 = sbr.rel (%p86) target = $region45
    $region44: #{tpu_custom_call.1} parent=1 // pred_region
      %vm89 = vcmask 261120
      %90 = vst.msk [vmem:[#allocation11] sm:$0xff] %vm89, 0.0
      %91 = vst.msk [vmem:[#allocation11 + $0x8] sm:$0xff] %vm89, 0.0
    $region45: #{tpu_custom_call.1} parent=1 // pred_fallthru
      _
    %v92 = vld [vmem:[#allocation2] sm:$0xff]
    %v93 = vld [vmem:[#allocation2 + $0x8] sm:$0xff]
    %v94 = vld [vmem:[#allocation5] sm:$0xff]
    %v95 = vld [vmem:[#allocation5 + $0x8] sm:$0xff]
    %v96 = vld [vmem:[#allocation5 + $0x10] sm:$0xff]
    %v97 = vld [vmem:[#allocation5 + $0x18] sm:$0xff]
    %v98 = vld [vmem:[#allocation7] sm:$0x1]
    %v100 = vlaneseq
    %v101 = vshrl.u32 %v100, 7
    %v102 = vsub.s32 0, %v101
    %v103 = vrot.slane %v98, %v102
    %vm105 = vcmask 261120
    %v107 = vsel %vm105, %v92, 0
    %v110 = vsel %vm105, %v93, 0
    %112 = vmatprep.subr.mxu0 0.0
    %113 = vmatpush1.msra.mxu0 %v94
    %114 = vmatprep.subr.mxu0 0.0
    %115 = vmatpush1.msra.mxu0 %v95
    %116 = vmatprep.subr.mxu0 0.0
    %117 = vmatpush1.msra.mxu0 %v96
    %118 = vmatprep.subr.mxu0 0.0
    %119 = vmatpush1.msra.mxu0 %v97
    %120 = vmatprep.subr.mxu0 0.0
    %121 = vmatpush1.msra.mxu0 0.0
    %122 = vmatprep.subr.mxu0 0.0
    %123 = vmatpush1.msra.mxu0 0.0
    %124 = vmatprep.subr.mxu0 0.0
    %125 = vmatpush1.msra.mxu0 0.0
    %126 = vmatprep.subr.mxu0 0.0
    %127 = vmatpush1.msra.mxu0 0.0
    %128 = vmatprep.subr.mxu0 0.0
    %129 = vmatpush1.msra.mxu0 0.0
    %130 = vmatprep.subr.mxu0 0.0
    %131 = vmatpush1.msra.mxu0 0.0
    %132 = vmatprep.subr.mxu0 0.0
    %133 = vmatpush1.msra.mxu0 0.0
    %134 = vmatprep.subr.mxu0 0.0
    %135 = vmatpush1.msra.mxu0 0.0
    %136 = vmatprep.subr.mxu0 0.0
    %137 = vmatpush1.msra.mxu0 0.0
    %138 = vmatprep.subr.mxu0 0.0
    %139 = vmatpush1.msra.mxu0 0.0
    %140 = vmatprep.subr.mxu0 0.0
    %141 = vmatpush1.msra.mxu0 0.0
    %142 = vmatprep.subr.mxu0 0.0
    %143 = vmatpush1.msra.mxu0 0.0
    %144 = vmatprep.subr.mxu0 0.0
    %145 = vmatpush1.msra.mxu0 0.0
    %146 = vmatprep.subr.mxu0 0.0
    %147 = vmatpush1.msra.mxu0 0.0
    %148 = vmatprep.subr.mxu0 0.0
    %149 = vmatpush1.msra.mxu0 0.0
    %150 = vmatprep.subr.mxu0 0.0
    %151 = vmatpush1.msra.mxu0 0.0
    %152 = vmatprep.subr.mxu0 0.0
    %153 = vmatpush1.msra.mxu0 0.0
    %154 = vmatprep.subr.mxu0 0.0
    %155 = vmatpush1.msra.mxu0 0.0
    %156 = vmatprep.subr.mxu0 0.0
    %157 = vmatpush1.msra.mxu0 0.0
    %158 = vmatprep.subr.mxu0 0.0
    %159 = vmatpush1.msra.mxu0 0.0
    %160 = vmatprep.subr.mxu0 0.0
    %161 = vmatpush1.msra.mxu0 0.0
    %162 = vmatprep.subr.mxu0 0.0
    %163 = vmatpush1.msra.mxu0 0.0
    %164 = vmatprep.subr.mxu0 0.0
    %165 = vmatpush1.msra.mxu0 0.0
    %166 = vmatprep.subr.mxu0 0.0
    %167 = vmatpush1.msra.mxu0 0.0
    %168 = vmatprep.subr.mxu0 0.0
    %169 = vmatpush1.msra.mxu0 0.0
    %170 = vmatprep.subr.mxu0 0.0
    %171 = vmatpush1.msra.mxu0 0.0
    %172 = vmatprep.subr.mxu0 0.0
    %173 = vmatpush1.msra.mxu0 0.0
    %174 = vmatprep.subr.mxu0 0.0
    %175 = vmatpush1.msra.mxu0 0.0
    %176 = vmatprep.mubr.f32.mxu0 0.0
    %177 = vmatmul.mubr.f32.gmra.mrb[0].mxu0 %v107
    %v178 = vpop.f32.mrb[0].mxu0
    %v179 = vadd.f32 %v103, %v178
    %v180 = vpop.f32.mrb[0].mxu0
    %181 = vmatprep.mubr.f32.mxu0 0.0
    %182 = vmatmul.mubr.f32.gmra.mrb[0].mxu0 %v110
    %v183 = vpop.f32.mrb[0].mxu0
    %v184 = vadd.f32 %v103, %v183
    %v185 = vpop.f32.mrb[0].mxu0
    %186 = vdwg.mxu0
    %v187 = vmul.f32 %v179, 0.5
    %v188 = vmul.f32 %v184, 0.5
    %v189 = vmul.f32 %v179, 0.70710677
    %v190 = vmul.f32 %v184, 0.70710677
    %v191 = verf.f32.pop %v189
    %v192 = verf.f32.pop %v190
    %v193 = vadd.f32 %v191, 1.0
    %v194 = vadd.f32 %v192, 1.0
    %v195 = vmul.f32 %v187, %v193
    %v196 = vmul.f32 %v188, %v194
    %v197 = vld [vmem:[#allocation11] sm:$0xff]
    %v198 = vld [vmem:[#allocation11 + $0x8] sm:$0xff]
    %v199 = vld [vmem:[#allocation8] sm:$0xff]
    %v200 = vld [vmem:[#allocation8 + $0x8] sm:$0xff]
    %v201 = vld [vmem:[#allocation8 + $0x10] sm:$0xff]
    %v202 = vld [vmem:[#allocation8 + $0x18] sm:$0xff]
    %v203 = vld [vmem:[#allocation8 + $0x20] sm:$0xff]
    %v204 = vld [vmem:[#allocation8 + $0x28] sm:$0xff]
    %v205 = vld [vmem:[#allocation8 + $0x30] sm:$0xff]
    %v206 = vld [vmem:[#allocation8 + $0x38] sm:$0xff]
    %v207 = vld [vmem:[#allocation8 + $0x40] sm:$0xff]
    %v208 = vld [vmem:[#allocation8 + $0x48] sm:$0xff]
    %v209 = vld [vmem:[#allocation8 + $0x50] sm:$0xff]
    %v210 = vld [vmem:[#allocation8 + $0x58] sm:$0xff]
    %v211 = vld [vmem:[#allocation8 + $0x60] sm:$0xff]
    %v212 = vld [vmem:[#allocation8 + $0x68] sm:$0xff]
    %v213 = vld [vmem:[#allocation8 + $0x70] sm:$0xff]
    %v214 = vld [vmem:[#allocation8 + $0x78] sm:$0xff]
    %215 = vmatprep.subr.mxu0 0.0
    %216 = vmatpush1.msra.mxu0 %v199
    %217 = vmatprep.subr.mxu0 0.0
    %218 = vmatpush1.msra.mxu0 %v200
    %219 = vmatprep.subr.mxu0 0.0
    %220 = vmatpush1.msra.mxu0 %v201
    %221 = vmatprep.subr.mxu0 0.0
    %222 = vmatpush1.msra.mxu0 %v202
    %223 = vmatprep.subr.mxu0 0.0
    %224 = vmatpush1.msra.mxu0 %v203
    %225 = vmatprep.subr.mxu0 0.0
    %226 = vmatpush1.msra.mxu0 %v204
    %227 = vmatprep.subr.mxu0 0.0
    %228 = vmatpush1.msra.mxu0 %v205
    %229 = vmatprep.subr.mxu0 0.0
    %230 = vmatpush1.msra.mxu0 %v206
    %231 = vmatprep.subr.mxu0 0.0
    %232 = vmatpush1.msra.mxu0 %v207
    %233 = vmatprep.subr.mxu0 0.0
    %234 = vmatpush1.msra.mxu0 %v208
    %235 = vmatprep.subr.mxu0 0.0
    %236 = vmatpush1.msra.mxu0 %v209
    %237 = vmatprep.subr.mxu0 0.0
    %238 = vmatpush1.msra.mxu0 %v210
    %239 = vmatprep.subr.mxu0 0.0
    %240 = vmatpush1.msra.mxu0 %v211
    %241 = vmatprep.subr.mxu0 0.0
    %242 = vmatpush1.msra.mxu0 %v212
    %243 = vmatprep.subr.mxu0 0.0
    %244 = vmatpush1.msra.mxu0 %v213
    %245 = vmatprep.subr.mxu0 0.0
    %246 = vmatpush1.msra.mxu0 %v214
    %247 = vmatprep.subr.mxu0 0.0
    %248 = vmatpush1.msra.mxu0 0.0
    %249 = vmatprep.subr.mxu0 0.0
    %250 = vmatpush1.msra.mxu0 0.0
    %251 = vmatprep.subr.mxu0 0.0
    %252 = vmatpush1.msra.mxu0 0.0
    %253 = vmatprep.subr.mxu0 0.0
    %254 = vmatpush1.msra.mxu0 0.0
    %255 = vmatprep.subr.mxu0 0.0
    %256 = vmatpush1.msra.mxu0 0.0
    %257 = vmatprep.subr.mxu0 0.0
    %258 = vmatpush1.msra.mxu0 0.0
    %259 = vmatprep.subr.mxu0 0.0
    %260 = vmatpush1.msra.mxu0 0.0
    %261 = vmatprep.subr.mxu0 0.0
    %262 = vmatpush1.msra.mxu0 0.0
    %263 = vmatprep.subr.mxu0 0.0
    %264 = vmatpush1.msra.mxu0 0.0
    %265 = vmatprep.subr.mxu0 0.0
    %266 = vmatpush1.msra.mxu0 0.0
    %267 = vmatprep.subr.mxu0 0.0
    %268 = vmatpush1.msra.mxu0 0.0
    %269 = vmatprep.subr.mxu0 0.0
    %270 = vmatpush1.msra.mxu0 0.0
    %271 = vmatprep.subr.mxu0 0.0
    %272 = vmatpush1.msra.mxu0 0.0
    %273 = vmatprep.subr.mxu0 0.0
    %274 = vmatpush1.msra.mxu0 0.0
    %275 = vmatprep.subr.mxu0 0.0
    %276 = vmatpush1.msra.mxu0 0.0
    %277 = vmatprep.subr.mxu0 0.0
    %278 = vmatpush1.msra.mxu0 0.0
    %279 = vmatprep.mubr.f32.mxu0 0.0
    %280 = vmatmul.mubr.f32.gmra.mrb[0].mxu0 %v195
    %v281 = vpop.f32.mrb[0].mxu0
    %v282 = vadd.f32 0.0, %v281
    %v283 = vpop.f32.mrb[0].mxu0
    %284 = vmatprep.mubr.f32.mxu0 0.0
    %285 = vmatmul.mubr.f32.gmra.mrb[0].mxu0 %v196
    %v286 = vpop.f32.mrb[0].mxu0
    %v287 = vadd.f32 0.0, %v286
    %v288 = vpop.f32.mrb[0].mxu0
    %289 = vdwg.mxu0
    %v290 = vadd.f32 %v197, %v282
    %v291 = vadd.f32 %v198, %v287
    %292 = vst.msk [vmem:[#allocation11] sm:$0xff] %vm105, %v290
    %293 = vst.msk [vmem:[#allocation11 + $0x8] sm:$0xff] %vm105, %v291
    // Predicated region
    $region46: #{tpu_custom_call.1} parent=1 // pred_check
      %p294 = pneg %p85
    $region47: #{tpu_custom_call.1} parent=1 // pred_check_branch
      %296 = sbr.rel (%p294) target = $region49
    $region48: #{tpu_custom_call.1} parent=1 // pred_region
      %v297 = vld [vmem:[#allocation11] sm:$0xff]
      %v298 = vld [vmem:[#allocation11 + $0x8] sm:$0xff]
      %v299 = vld [vmem:[#allocation10] sm:$0x1]
      %v301 = vlaneseq
      %v302 = vshrl.u32 %v301, 7
      %v303 = vsub.s32 0, %v302
      %v304 = vrot.slane %v299, %v303
      %v306 = vadd.f32 %v297, %v304
      %v307 = vadd.f32 %v298, %v304
      %308 = vst.msk [vmem:[#allocation11] sm:$0xff] %vm105, %v306
      %309 = vst.msk [vmem:[#allocation11 + $0x8] sm:$0xff] %vm105, %v307
    $region49: #{tpu_custom_call.1} parent=1 // pred_fallthru
      _
    // Predicated region
    $region50: #{tpu_custom_call.1} parent=1 // pred_check
      _
    $region51: #{tpu_custom_call.1} parent=1 // pred_check_branch
      %311 = sbr.rel (0) target = $region53
    $region52: #{tpu_custom_call.1} parent=1 // pred_region
      %s313 = ssub.s32 256, 256
      %314 = vsyncadd [#allocation4], %s313
      %s315 = sshll.u32 [#allocation11], 4
      %s316 = int_to_ptr.vmem [resolvable:$true] %s315
      %321 = dma.vmem_to_hbm [thread:$0]  %s316, 256, %s5, [#allocation4], 128, 128, 8
    $region53: #{tpu_custom_call.1} parent=1 // pred_fallthru
      _
    // Predicated region
    $region54: #{tpu_custom_call.1} parent=1 // pred_check
      _
    $region55: #{tpu_custom_call.1} parent=1 // pred_check_branch
      %323 = sbr.rel (0) target = $region57
    $region56: #{tpu_custom_call.1} parent=1 // pred_region
      %324 = dma.done [#allocation4], 256
    $region57: #{tpu_custom_call.1} parent=1 // pred_fallthru
      _
    %325 = vsyncpa [#allocation3], 1
    %326 = vsyncpa [#allocation6], 1
    %327 = vsyncpa [#allocation9], 1
    %328 = vsyncpa [#allocation4], 1

</llo_original>
